<compile_context>
chip_gen: v7x
topology: tpu7x:2x2x1
jax: 0.10.0
libtpu: 0.0.40
codegen_flags: <defaults>
</compile_context>

<pallas_src>
import functools

import jax
import jax.numpy as jnp
from jax.experimental import pallas as pl
from jax.experimental.pallas import tpu as pltpu

H1, H1_PAD = 400, 512      # fc1 width, padded to multiple of 128
H2, H2_PAD = 300, 384      # fc2 width, padded to multiple of 128
OUT_PAD = 128              # padded output lane width (>= action_size)


def actor_kernel(state_ref, w1_ref, gamma_ref, beta_ref,
                 w2_ref, b2_ref, w3_ref, b3_ref, out_ref):
    eps = 1e-5

    # fc1 (bias omitted: cancelled exactly by the BN batch-mean subtraction)
    x0 = state_ref[...].astype(jnp.bfloat16)
    h1 = jnp.dot(x0, w1_ref[...], preferred_element_type=jnp.float32)

    # BatchNorm1d (training mode: batch statistics, biased variance) — f32
    mean = jnp.mean(h1, axis=0, keepdims=True)
    centered = h1 - mean
    var = jnp.mean(centered * centered, axis=0, keepdims=True)
    h1n = centered * jax.lax.rsqrt(var + eps) * gamma_ref[...] + beta_ref[...]

    # relu -> fc2 -> relu
    x1 = jnp.maximum(h1n, 0.0).astype(jnp.bfloat16)
    h2 = jnp.dot(x1, w2_ref[...], preferred_element_type=jnp.float32) + b2_ref[...]
    x2 = jnp.maximum(h2, 0.0).astype(jnp.bfloat16)

    # fc3 -> tanh
    h3 = jnp.dot(x2, w3_ref[...], preferred_element_type=jnp.float32) + b3_ref[...]
    out_ref[...] = jnp.tanh(h3)


@functools.partial(jax.jit, static_argnames=("action_size",))
def actor_forward(state, params, action_size):
    B = state.shape[0]
    vmem = pl.BlockSpec(memory_space=pltpu.MemorySpace.VMEM)
    out_padded = pl.pallas_call(
        actor_kernel,
        out_shape=jax.ShapeDtypeStruct((B, OUT_PAD), jnp.float32),
        in_specs=[vmem] * 8,
        out_specs=vmem,
    )(state,
      params["w1"], params["gamma1"], params["beta1"],
      params["w2"], params["b2"], params["w3"], params["b3"])
    # slice away the lane padding outside the kernel (keeps in-kernel stores lane-dense)
    return out_padded[:, :action_size]


def init_actor_params(key, state_size, action_size):
    """Deterministic synthetic init mirroring Actor.__init__/reset_parameters.

    Weights are stored transposed (in, out), zero-padded to lane-aligned
    widths, and cast to bfloat16 for the MXU's native bf16 path.
    fc1's bias is intentionally not created: it is cancelled by train-mode BN.
    """
    ks = jax.random.split(key, 5)

    # fc1.weight ~ U(-1/sqrt(400), 1/sqrt(400))  (hidden_init uses weight.size(0))
    lim1 = 1.0 / jnp.sqrt(400.0)
    w1 = jax.random.uniform(ks[0], (state_size, H1), jnp.float32, -lim1, lim1)

    lim2 = 1.0 / jnp.sqrt(300.0)
    w2 = jax.random.uniform(ks[1], (H1, H2), jnp.float32, -lim2, lim2)
    bl2 = 1.0 / jnp.sqrt(float(H1))
    b2 = jax.random.uniform(ks[2], (1, H2), jnp.float32, -bl2, bl2)

    w3 = jax.random.uniform(ks[3], (H2, action_size), jnp.float32, -0.003, 0.003)
    bl3 = 1.0 / jnp.sqrt(float(H2))
    b3 = jax.random.uniform(ks[4], (1, action_size), jnp.float32, -bl3, bl3)

    # BatchNorm1d default affine params
    gamma1 = jnp.ones((1, H1), jnp.float32)
    beta1 = jnp.zeros((1, H1), jnp.float32)

    # --- zero-pad to lane-aligned widths -------------------------------------
    w1p = jnp.zeros((state_size, H1_PAD), jnp.float32).at[:, :H1].set(w1)
    gamma1p = jnp.ones((1, H1_PAD), jnp.float32).at[:, :H1].set(gamma1)
    beta1p = jnp.zeros((1, H1_PAD), jnp.float32).at[:, :H1].set(beta1)

    w2p = jnp.zeros((H1_PAD, H2_PAD), jnp.float32).at[:H1, :H2].set(w2)
    b2p = jnp.zeros((1, H2_PAD), jnp.float32).at[:, :H2].set(b2)

    w3p = jnp.zeros((H2_PAD, OUT_PAD), jnp.float32).at[:H2, :action_size].set(w3)
    b3p = jnp.zeros((1, OUT_PAD), jnp.float32).at[:, :action_size].set(b3)

    return {
        "w1": w1p.astype(jnp.bfloat16),
        "gamma1": gamma1p, "beta1": beta1p,
        "w2": w2p.astype(jnp.bfloat16), "b2": b2p,
        "w3": w3p.astype(jnp.bfloat16), "b3": b3p,
    }


if __name__ == "__main__":
    state_size = 33   # Reacher observation size
    action_size = 4   # Reacher action size
    batch = 8

    key = jax.random.PRNGKey(0)
    pkey, skey = jax.random.split(key)
    params = init_actor_params(pkey, state_size, action_size)
    state = jax.random.normal(skey, (batch, state_size), jnp.float32)

    out = actor_forward(state, params, action_size)
    jax.block_until_ready(out)

    assert out.shape == (batch, action_size)
    assert bool(jnp.all(jnp.abs(out) <= 1.0))  # tanh range sanity check
    assert bool(jnp.all(jnp.isfinite(out)))
    print("KERNEL_OK")
</pallas_src>

<mosaic_0001>
module attributes {stable_mosaic.version = 11 : i64} {
  func.func @actor_kernel(%arg0: memref<8x33xf32, #tpu.memory_space<vmem>>, %arg1: memref<33x512xbf16, #tpu.memory_space<vmem>>, %arg2: memref<1x512xf32, #tpu.memory_space<vmem>>, %arg3: memref<1x512xf32, #tpu.memory_space<vmem>>, %arg4: memref<512x384xbf16, #tpu.memory_space<vmem>>, %arg5: memref<1x384xf32, #tpu.memory_space<vmem>>, %arg6: memref<384x128xbf16, #tpu.memory_space<vmem>>, %arg7: memref<1x128xf32, #tpu.memory_space<vmem>>, %arg8: memref<8x128xf32, #tpu.memory_space<vmem>>) attributes {dimension_semantics = [], scalar_prefetch = 0 : i64, scratch_operands = 0 : i64, tpu.core_type = #tpu.core_type<tc>} {
    %c0 = arith.constant 0 : index
    %c0_0 = arith.constant 0 : index
    %0 = vector.load %arg0[%c0, %c0_0] : memref<8x33xf32, #tpu.memory_space<vmem>>, vector<8x33xf32>
    %1 = arith.truncf %0 : vector<8x33xf32> to vector<8x33xbf16>
    %c0_1 = arith.constant 0 : index
    %c0_2 = arith.constant 0 : index
    %2 = vector.load %arg1[%c0_1, %c0_2] : memref<33x512xbf16, #tpu.memory_space<vmem>>, vector<33x512xbf16>
    %cst = arith.constant dense<0.000000e+00> : vector<8x512xf32>
    %3 = tpu.matmul %1, %2, %cst {dimension_numbers = #tpu.dot_dimension_numbers<[1], [0], [0], [1], [0, 0, 1, 1], [], []>} : vector<8x33xbf16>, vector<33x512xbf16>, vector<8x512xf32> -> vector<8x512xf32>
    %cst_3 = arith.constant dense<0.000000e+00> : vector<512xf32>
    %4 = vector.multi_reduction <add>, %3, %cst_3 [0] : vector<8x512xf32> to vector<512xf32>
    %5 = vector.shape_cast %4 : vector<512xf32> to vector<1x512xf32>
    %cst_4 = arith.constant 8.000000e+00 : f32
    %6 = vector.broadcast %cst_4 : f32 to vector<1x512xf32>
    %7 = arith.divf %5, %6 : vector<1x512xf32>
    %8 = vector.broadcast %7 : vector<1x512xf32> to vector<8x512xf32>
    %9 = arith.subf %3, %8 : vector<8x512xf32>
    %10 = arith.mulf %9, %9 : vector<8x512xf32>
    %cst_5 = arith.constant dense<0.000000e+00> : vector<512xf32>
    %11 = vector.multi_reduction <add>, %10, %cst_5 [0] : vector<8x512xf32> to vector<512xf32>
    %12 = vector.shape_cast %11 : vector<512xf32> to vector<1x512xf32>
    %cst_6 = arith.constant 8.000000e+00 : f32
    %13 = vector.broadcast %cst_6 : f32 to vector<1x512xf32>
    %14 = arith.divf %12, %13 : vector<1x512xf32>
    %cst_7 = arith.constant 9.99999974E-6 : f32
    %15 = vector.broadcast %cst_7 : f32 to vector<1x512xf32>
    %16 = arith.addf %14, %15 : vector<1x512xf32>
    %17 = math.rsqrt %16 : vector<1x512xf32>
    %18 = vector.broadcast %17 : vector<1x512xf32> to vector<8x512xf32>
    %19 = arith.mulf %9, %18 : vector<8x512xf32>
    %c0_8 = arith.constant 0 : index
    %c0_9 = arith.constant 0 : index
    %20 = vector.load %arg2[%c0_8, %c0_9] : memref<1x512xf32, #tpu.memory_space<vmem>>, vector<1x512xf32>
    %21 = vector.broadcast %20 : vector<1x512xf32> to vector<8x512xf32>
    %22 = arith.mulf %19, %21 : vector<8x512xf32>
    %c0_10 = arith.constant 0 : index
    %c0_11 = arith.constant 0 : index
    %23 = vector.load %arg3[%c0_10, %c0_11] : memref<1x512xf32, #tpu.memory_space<vmem>>, vector<1x512xf32>
    %24 = vector.broadcast %23 : vector<1x512xf32> to vector<8x512xf32>
    %25 = arith.addf %22, %24 : vector<8x512xf32>
    %cst_12 = arith.constant 0.000000e+00 : f32
    %26 = vector.broadcast %cst_12 : f32 to vector<8x512xf32>
    %27 = arith.maximumf %25, %26 : vector<8x512xf32>
    %28 = arith.truncf %27 : vector<8x512xf32> to vector<8x512xbf16>
    %c0_13 = arith.constant 0 : index
    %c0_14 = arith.constant 0 : index
    %29 = vector.load %arg4[%c0_13, %c0_14] : memref<512x384xbf16, #tpu.memory_space<vmem>>, vector<512x384xbf16>
    %cst_15 = arith.constant dense<0.000000e+00> : vector<8x384xf32>
    %30 = tpu.matmul %28, %29, %cst_15 {dimension_numbers = #tpu.dot_dimension_numbers<[1], [0], [0], [1], [0, 0, 1, 1], [], []>} : vector<8x512xbf16>, vector<512x384xbf16>, vector<8x384xf32> -> vector<8x384xf32>
    %c0_16 = arith.constant 0 : index
    %c0_17 = arith.constant 0 : index
    %31 = vector.load %arg5[%c0_16, %c0_17] : memref<1x384xf32, #tpu.memory_space<vmem>>, vector<1x384xf32>
    %32 = vector.broadcast %31 : vector<1x384xf32> to vector<8x384xf32>
    %33 = arith.addf %30, %32 : vector<8x384xf32>
    %cst_18 = arith.constant 0.000000e+00 : f32
    %34 = vector.broadcast %cst_18 : f32 to vector<8x384xf32>
    %35 = arith.maximumf %33, %34 : vector<8x384xf32>
    %36 = arith.truncf %35 : vector<8x384xf32> to vector<8x384xbf16>
    %c0_19 = arith.constant 0 : index
    %c0_20 = arith.constant 0 : index
    %37 = vector.load %arg6[%c0_19, %c0_20] : memref<384x128xbf16, #tpu.memory_space<vmem>>, vector<384x128xbf16>
    %cst_21 = arith.constant dense<0.000000e+00> : vector<8x128xf32>
    %38 = tpu.matmul %36, %37, %cst_21 {dimension_numbers = #tpu.dot_dimension_numbers<[1], [0], [0], [1], [0, 0, 1, 1], [], []>} : vector<8x384xbf16>, vector<384x128xbf16>, vector<8x128xf32> -> vector<8x128xf32>
    %c0_22 = arith.constant 0 : index
    %c0_23 = arith.constant 0 : index
    %39 = vector.load %arg7[%c0_22, %c0_23] : memref<1x128xf32, #tpu.memory_space<vmem>>, vector<1x128xf32>
    %40 = vector.broadcast %39 : vector<1x128xf32> to vector<8x128xf32>
    %41 = arith.addf %38, %40 : vector<8x128xf32>
    %42 = math.tanh %41 : vector<8x128xf32>
    %c0_24 = arith.constant 0 : index
    %c0_25 = arith.constant 0 : index
    %43 = vector.load %arg8[%c0_24, %c0_25] : memref<8x128xf32, #tpu.memory_space<vmem>>, vector<8x128xf32>
    tpu.vector_store %arg8[%c0_24, %c0_25], %42 {strides = array<i32>} : memref<8x128xf32, #tpu.memory_space<vmem>>, vector<8x128xf32>,
    return
  }
}

</mosaic_0001>

<llo_original>
// kernel: actor_forward.1
$region0: #{actor_forward.1}
  #allocation0 [shape = 'u32[]', space=smem, size = 0x4, offset = 0x4, fixed_abs, tag = 'smem constant byte address 0x4 - core index']
  #allocation1 [shape = 'u32[144,128]{1,0:T(1,128)}', space=vmem, size = 0x12000, scoped, tag = 'internal scratch']
  %s0 = inlined_call_operand.hbm [shape: f32[8,33], index: 0, kind: input, shape index: {}]
  %s1 = inlined_call_operand.hbm [shape: bf16[33,512], index: 1, kind: input, shape index: {}]
  %s2 = inlined_call_operand.vmem [shape: f32[1,512], index: 2, kind: input, shape index: {}]
  %s3 = inlined_call_operand.vmem [shape: f32[1,512], index: 3, kind: input, shape index: {}]
  %s4 = inlined_call_operand.hbm [shape: bf16[512,384], index: 4, kind: input, shape index: {}]
  %s5 = inlined_call_operand.vmem [shape: f32[1,384], index: 5, kind: input, shape index: {}]
  %s6 = inlined_call_operand.hbm [shape: bf16[384,128], index: 6, kind: input, shape index: {}]
  %s7 = inlined_call_operand.hbm [shape: f32[1,128], index: 7, kind: input, shape index: {}]
  %s8 = inlined_call_operand.vmem [shape: f32[8,128], index: 8, kind: output, shape index: {}]
  %s9 = sld [smem:[#allocation0]]
  $region62: #{actor_forward.1} parent=0
    _
  %s11 = ssub.s32 1, %s9
  %s12 = scalar_select 0, %s11, %s9
  $region1: #{actor_forward.1} parent=0
    #allocation2 [shape = 'u8[4096]{0}', space=vmem, size = 0x1000, scoped, tag = 'input window, operand 0, single buffered']
    #allocation3 [shape = 's32[1]{0}', space=sflag, size = 0x4, scoped, tag = 'scoped memory for actor_forward.1']
    #allocation4 [shape = 'u8[40960]{0}', space=vmem, size = 0xa000, scoped, tag = 'input window, operand 1, single buffered']
    #allocation5 [shape = 's32[1]{0}', space=sflag, size = 0x4, scoped, tag = 'scoped memory for actor_forward.1']
    #allocation6 [shape = 'u8[393216]{0}', space=vmem, size = 0x60000, scoped, tag = 'input window, operand 4, single buffered']
    #allocation7 [shape = 'u8[98304]{0}', space=vmem, size = 0x18000, scoped, tag = 'input window, operand 6, single buffered']
    #allocation8 [shape = 's32[1]{0}', space=sflag, size = 0x4, scoped, tag = 'scoped memory for actor_forward.1']
    #allocation9 [shape = 'u8[512]{0}', space=vmem, size = 0x400, scoped, tag = 'input window, operand 7, single buffered']
    %13 = vsyncpa [#allocation3], 0
    %14 = vsyncpa [#allocation5], 0
    %15 = vsyncpa [#allocation8], 0
    // Predicated region
    $region2: #{actor_forward.1} parent=1 // pred_check
      _
    $region3: #{actor_forward.1} parent=1 // pred_check_branch
      %17 = sbr.rel (0) target = $region5
    $region4: #{actor_forward.1} parent=1 // pred_region
      %s19 = ssub.s32 128, 128
      %20 = vsyncadd [#allocation3], %s19
      %s22 = sshll.u32 [#allocation2], 4
      %s23 = int_to_ptr.vmem [resolvable:$true] %s22
      %25 = dma.hbm_to_vmem [thread:$0]  %s0, 128, %s23, [#allocation3]
    $region5: #{actor_forward.1} parent=1 // pred_fallthru
      _
    // Predicated region
    $region6: #{actor_forward.1} parent=1 // pred_check
      _
    $region7: #{actor_forward.1} parent=1 // pred_check_branch
      %27 = sbr.rel (0) target = $region9
    $region8: #{actor_forward.1} parent=1 // pred_region
      %s29 = ssub.s32 1280, 1280
      %30 = vsyncadd [#allocation5], %s29
      %s31 = sshll.u32 [#allocation4], 4
      %s32 = int_to_ptr.vmem [resolvable:$true] %s31
      %37 = dma.hbm_to_vmem [thread:$0]  %s1, 1280, %s32, [#allocation5], 256, 256, 16
    $region9: #{actor_forward.1} parent=1 // pred_fallthru
      _
    // Predicated region
    $region10: #{actor_forward.1} parent=1 // pred_check
      _
    $region11: #{actor_forward.1} parent=1 // pred_check_branch
      %39 = sbr.rel (0) target = $region13
    $region12: #{actor_forward.1} parent=1 // pred_region
      _
    $region13: #{actor_forward.1} parent=1 // pred_fallthru
      _
    // Predicated region
    $region14: #{actor_forward.1} parent=1 // pred_check
      _
    $region15: #{actor_forward.1} parent=1 // pred_check_branch
      %41 = sbr.rel (0) target = $region17
    $region16: #{actor_forward.1} parent=1 // pred_region
      _
    $region17: #{actor_forward.1} parent=1 // pred_fallthru
      _
    // Predicated region
    $region18: #{actor_forward.1} parent=1 // pred_check
      _
    $region19: #{actor_forward.1} parent=1 // pred_check_branch
      %43 = sbr.rel (0) target = $region21
    $region20: #{actor_forward.1} parent=1 // pred_region
      %s45 = ssub.s32 12288, 12288
      %46 = vsyncadd [#allocation5], %s45
      %s47 = sshll.u32 [#allocation6], 4
      %s48 = int_to_ptr.vmem [resolvable:$true] %s47
      %53 = dma.hbm_to_vmem [thread:$0]  %s4, 12288, %s48, [#allocation5], 192, 192, 12
    $region21: #{actor_forward.1} parent=1 // pred_fallthru
      _
    // Predicated region
    $region22: #{actor_forward.1} parent=1 // pred_check
      _
    $region23: #{actor_forward.1} parent=1 // pred_check_branch
      %55 = sbr.rel (0) target = $region25
    $region24: #{actor_forward.1} parent=1 // pred_region
      _
    $region25: #{actor_forward.1} parent=1 // pred_fallthru
      _
    // Predicated region
    $region26: #{actor_forward.1} parent=1 // pred_check
      _
    $region27: #{actor_forward.1} parent=1 // pred_check_branch
      %57 = sbr.rel (0) target = $region29
    $region28: #{actor_forward.1} parent=1 // pred_region
      %s59 = ssub.s32 3072, 3072
      %60 = vsyncadd [#allocation8], %s59
      %s61 = sshll.u32 [#allocation7], 4
      %s62 = int_to_ptr.vmem [resolvable:$true] %s61
      %67 = dma.hbm_to_vmem [thread:$0]  %s6, 3072, %s62, [#allocation8], 64, 64, 4
    $region29: #{actor_forward.1} parent=1 // pred_fallthru
      _
    // Predicated region
    $region30: #{actor_forward.1} parent=1 // pred_check
      _
    $region31: #{actor_forward.1} parent=1 // pred_check_branch
      %69 = sbr.rel (0) target = $region33
    $region32: #{actor_forward.1} parent=1 // pred_region
      %s71 = ssub.s32 16, 16
      %72 = vsyncadd [#allocation8], %s71
      %s74 = sshll.u32 [#allocation9], 4
      %s75 = int_to_ptr.vmem [resolvable:$true] %s74
      %77 = dma.hbm_to_vmem [thread:$0]  %s7, 16, %s75, [#allocation8]
    $region33: #{actor_forward.1} parent=1 // pred_fallthru
      _
    // Predicated region
    $region34: #{actor_forward.1} parent=1 // pred_check
      _
    $region35: #{actor_forward.1} parent=1 // pred_check_branch
      %79 = sbr.rel (0) target = $region37
    $region36: #{actor_forward.1} parent=1 // pred_region
      %80 = dma.done [#allocation3], 128
    $region37: #{actor_forward.1} parent=1 // pred_fallthru
      _
    // Predicated region
    $region38: #{actor_forward.1} parent=1 // pred_check
      _
    $region39: #{actor_forward.1} parent=1 // pred_check_branch
      %82 = sbr.rel (0) target = $region41
    $region40: #{actor_forward.1} parent=1 // pred_region
      %83 = dma.done [#allocation5], 1280
    $region41: #{actor_forward.1} parent=1 // pred_fallthru
      _
    // Predicated region
    $region42: #{actor_forward.1} parent=1 // pred_check
      _
    $region43: #{actor_forward.1} parent=1 // pred_check_branch
      %85 = sbr.rel (0) target = $region45
    $region44: #{actor_forward.1} parent=1 // pred_region
      %86 = dma.done [#allocation5], 12288
    $region45: #{actor_forward.1} parent=1 // pred_fallthru
      _
    // Predicated region
    $region46: #{actor_forward.1} parent=1 // pred_check
      _
    $region47: #{actor_forward.1} parent=1 // pred_check_branch
      %88 = sbr.rel (0) target = $region49
    $region48: #{actor_forward.1} parent=1 // pred_region
      %89 = dma.done [#allocation8], 3072
    $region49: #{actor_forward.1} parent=1 // pred_fallthru
      _
    // Predicated region
    $region50: #{actor_forward.1} parent=1 // pred_check
      _
    $region51: #{actor_forward.1} parent=1 // pred_check_branch
      %91 = sbr.rel (0) target = $region53
    $region52: #{actor_forward.1} parent=1 // pred_region
      %92 = dma.done [#allocation8], 16
    $region53: #{actor_forward.1} parent=1 // pred_fallthru
      _
    %v94 = vld [vmem:[#allocation2] sm:$0xff]
    %v95 = vpack.c.bf16 %v94, %v94
    %v96 = vld [vmem:[#allocation4] sm:$0xff]
    %v97 = vld [vmem:[#allocation4 + $0x8] sm:$0xff]
    %v98 = vld [vmem:[#allocation4 + $0x10] sm:$0xff]
    %v99 = vld [vmem:[#allocation4 + $0x18] sm:$0xff]
    %v100 = vld [vmem:[#allocation4 + $0x20] sm:$0xff]
    %v101 = vld [vmem:[#allocation4 + $0x28] sm:$0xff]
    %v102 = vld [vmem:[#allocation4 + $0x30] sm:$0xff]
    %v103 = vld [vmem:[#allocation4 + $0x38] sm:$0xff]
    %v104 = vld [vmem:[#allocation4 + $0x40] sm:$0x11]
    %v105 = vld [vmem:[#allocation4 + $0x48] sm:$0x11]
    %v116 = vunpack.c.l.b16 %v96
    %v117 = vunpack.c.h.b16 %v96
    %v118 = vunpack.c.l.b16 %v97
    %v119 = vunpack.c.h.b16 %v97
    %v120 = vunpack.c.l.b16 %v98
    %v121 = vunpack.c.h.b16 %v98
    %v122 = vunpack.c.l.b16 %v99
    %v123 = vunpack.c.h.b16 %v99
    %v124 = vunpack.c.l.b16 %v100
    %v125 = vunpack.c.h.b16 %v100
    %v126 = vunpack.c.l.b16 %v101
    %v127 = vunpack.c.h.b16 %v101
    %v128 = vunpack.c.l.b16 %v102
    %v129 = vunpack.c.h.b16 %v102
    %v130 = vunpack.c.l.b16 %v103
    %v131 = vunpack.c.h.b16 %v103
    %v132 = vunpack.c.l.b16 %v104
    %v133 = vunpack.c.h.b16 %v104
    %v134 = vunpack.c.l.b16 %v105
    %v135 = vunpack.c.h.b16 %v105
    %v136 = vpack.c.b16 %v120, %v116
    %v137 = vpack.c.b16 %v121, %v117
    %v138 = vpack.c.b16 %v122, %v118
    %v139 = vpack.c.b16 %v123, %v119
    %v140 = vpack.c.b16 %v128, %v124
    %v141 = vpack.c.b16 %v129, %v125
    %v142 = vpack.c.b16 %v130, %v126
    %v143 = vpack.c.b16 %v131, %v127
    %v144 = vpack.c.b16 %v132, %v132
    %v145 = vpack.c.b16 %v133, %v133
    %v146 = vpack.c.b16 %v134, %v134
    %v147 = vpack.c.b16 %v135, %v135
    %vm156 = vcmask 269312
    %v158 = vsel %vm156, %v95, 0
    %vm160 = vcmask 1040384
    %v161 = vsel 0, 4294967295, 65535
    %v162 = vsel %vm160, %v161, 0
    %v164 = vand.u32 %v144, %v162
    %v167 = vand.u32 %v145, %v162
    %v170 = vand.u32 %v146, %v162
    %v173 = vand.u32 %v147, %v162
    %175 = vmatprep.subr.bf16.mxu0 %v137
    %176 = vmatpush1.bf16.msra.mxu0 %v136
    %177 = vmatprep.subr.bf16.mxu0 %v141
    %178 = vmatpush1.bf16.msra.mxu0 %v140
    %179 = vmatprep.subr.bf16.mxu0 %v167
    %180 = vmatpush1.bf16.msra.mxu0 %v164
    %181 = vmatprep.subr.bf16.mxu0 0
    %182 = vmatpush1.bf16.msra.mxu0 0
    %183 = vmatprep.subr.bf16.mxu0 0
    %184 = vmatpush1.bf16.msra.mxu0 0
    %185 = vmatprep.subr.bf16.mxu0 0
    %186 = vmatpush1.bf16.msra.mxu0 0
    %187 = vmatprep.subr.bf16.mxu0 0
    %188 = vmatpush1.bf16.msra.mxu0 0
    %189 = vmatprep.subr.bf16.mxu0 0
    %190 = vmatpush1.bf16.msra.mxu0 0
    %191 = vmatprep.subr.bf16.mxu0 0
    %192 = vmatpush1.bf16.msra.mxu0 0
    %193 = vmatprep.subr.bf16.mxu0 0
    %194 = vmatpush1.bf16.msra.mxu0 0
    %195 = vmatprep.subr.bf16.mxu0 0
    %196 = vmatpush1.bf16.msra.mxu0 0
    %197 = vmatprep.subr.bf16.mxu0 0
    %198 = vmatpush1.bf16.msra.mxu0 0
    %199 = vmatprep.subr.bf16.mxu0 0
    %200 = vmatpush1.bf16.msra.mxu0 0
    %201 = vmatprep.subr.bf16.mxu0 0
    %202 = vmatpush1.bf16.msra.mxu0 0
    %203 = vmatprep.subr.bf16.mxu0 0
    %204 = vmatpush1.bf16.msra.mxu0 0
    %205 = vmatprep.subr.bf16.mxu0 0
    %206 = vmatpush1.bf16.msra.mxu0 0
    %207 = vmatprep.mubr.bf16.mxu0 0
    %208 = vmatmul.mubr.bf16.gmra.mrb[0].mxu0 %v158
    %v209 = vpop.f32.mrb[0].mxu0
    %v210 = vadd.f32 0.0, %v209
    %v211 = vpop.f32.mrb[0].mxu0
    %v212 = vadd.f32 0.0, %v211
    %v213 = vpop.f32.mrb[0].mxu0
    %v214 = vpop.f32.mrb[0].mxu0
    %215 = vdwg.mxu0
    %216 = vmatprep.subr.bf16.mxu0 %v139
    %217 = vmatpush1.bf16.msra.mxu0 %v138
    %218 = vmatprep.subr.bf16.mxu0 %v143
    %219 = vmatpush1.bf16.msra.mxu0 %v142
    %220 = vmatprep.subr.bf16.mxu0 %v173
    %221 = vmatpush1.bf16.msra.mxu0 %v170
    %222 = vmatprep.subr.bf16.mxu0 0
    %223 = vmatpush1.bf16.msra.mxu0 0
    %224 = vmatprep.subr.bf16.mxu0 0
    %225 = vmatpush1.bf16.msra.mxu0 0
    %226 = vmatprep.subr.bf16.mxu0 0
    %227 = vmatpush1.bf16.msra.mxu0 0
    %228 = vmatprep.subr.bf16.mxu0 0
    %229 = vmatpush1.bf16.msra.mxu0 0
    %230 = vmatprep.subr.bf16.mxu0 0
    %231 = vmatpush1.bf16.msra.mxu0 0
    %232 = vmatprep.subr.bf16.mxu0 0
    %233 = vmatpush1.bf16.msra.mxu0 0
    %234 = vmatprep.subr.bf16.mxu0 0
    %235 = vmatpush1.bf16.msra.mxu0 0
    %236 = vmatprep.subr.bf16.mxu0 0
    %237 = vmatpush1.bf16.msra.mxu0 0
    %238 = vmatprep.subr.bf16.mxu0 0
    %239 = vmatpush1.bf16.msra.mxu0 0
    %240 = vmatprep.subr.bf16.mxu0 0
    %241 = vmatpush1.bf16.msra.mxu0 0
    %242 = vmatprep.subr.bf16.mxu0 0
    %243 = vmatpush1.bf16.msra.mxu0 0
    %244 = vmatprep.subr.bf16.mxu0 0
    %245 = vmatpush1.bf16.msra.mxu0 0
    %246 = vmatprep.subr.bf16.mxu0 0
    %247 = vmatpush1.bf16.msra.mxu0 0
    %248 = vmatprep.mubr.bf16.mxu0 0
    %249 = vmatmul.mubr.bf16.gmra.mrb[0].mxu0 %v158
    %v250 = vpop.f32.mrb[0].mxu0
    %v251 = vadd.f32 0.0, %v250
    %v252 = vpop.f32.mrb[0].mxu0
    %v253 = vadd.f32 0.0, %v252
    %v254 = vpop.f32.mrb[0].mxu0
    %v255 = vpop.f32.mrb[0].mxu0
    %256 = vdwg.mxu0
    %v257 = vrot.slane %v210, 4
    %v258 = vadd.f32 %v210, %v257
    %v259 = vrot.slane %v258, 2
    %v260 = vadd.f32 %v258, %v259
    %v261 = vrot.slane %v260, 1
    %v262 = vadd.f32 %v260, %v261
    %v263 = vrot.slane %v212, 4
    %v264 = vadd.f32 %v212, %v263
    %v265 = vrot.slane %v264, 2
    %v266 = vadd.f32 %v264, %v265
    %v267 = vrot.slane %v266, 1
    %v268 = vadd.f32 %v266, %v267
    %v269 = vrot.slane %v251, 4
    %v270 = vadd.f32 %v251, %v269
    %v271 = vrot.slane %v270, 2
    %v272 = vadd.f32 %v270, %v271
    %v273 = vrot.slane %v272, 1
    %v274 = vadd.f32 %v272, %v273
    %v275 = vrot.slane %v253, 4
    %v276 = vadd.f32 %v253, %v275
    %v277 = vrot.slane %v276, 2
    %v278 = vadd.f32 %v276, %v277
    %v279 = vrot.slane %v278, 1
    %v280 = vadd.f32 %v278, %v279
    %v281 = vrcp.pop 8.0
    %v282 = vmul.f32 %v262, %v281
    %v283 = vmul.f32 %v268, %v281
    %v284 = vmul.f32 %v274, %v281
    %v285 = vmul.f32 %v280, %v281
    %v286 = vsub.f32 %v210, %v282
    %v287 = vsub.f32 %v212, %v283
    %v288 = vsub.f32 %v251, %v284
    %v289 = vsub.f32 %v253, %v285
    %v290 = vmul.f32 %v286, %v286
    %v291 = vmul.f32 %v287, %v287
    %v292 = vmul.f32 %v288, %v288
    %v293 = vmul.f32 %v289, %v289
    %v294 = vrot.slane %v290, 4
    %v295 = vadd.f32 %v290, %v294
    %v296 = vrot.slane %v295, 2
    %v297 = vadd.f32 %v295, %v296
    %v298 = vrot.slane %v297, 1
    %v299 = vadd.f32 %v297, %v298
    %v300 = vrot.slane %v291, 4
    %v301 = vadd.f32 %v291, %v300
    %v302 = vrot.slane %v301, 2
    %v303 = vadd.f32 %v301, %v302
    %v304 = vrot.slane %v303, 1
    %v305 = vadd.f32 %v303, %v304
    %v306 = vrot.slane %v292, 4
    %v307 = vadd.f32 %v292, %v306
    %v308 = vrot.slane %v307, 2
    %v309 = vadd.f32 %v307, %v308
    %v310 = vrot.slane %v309, 1
    %v311 = vadd.f32 %v309, %v310
    %v312 = vrot.slane %v293, 4
    %v313 = vadd.f32 %v293, %v312
    %v314 = vrot.slane %v313, 2
    %v315 = vadd.f32 %v313, %v314
    %v316 = vrot.slane %v315, 1
    %v317 = vadd.f32 %v315, %v316
    %v318 = vmul.f32 %v299, %v281
    %v319 = vmul.f32 %v305, %v281
    %v320 = vmul.f32 %v311, %v281
    %v321 = vmul.f32 %v317, %v281
    %v322 = vadd.f32 %v318, 1e-05
    %v323 = vadd.f32 %v319, 1e-05
    %v324 = vadd.f32 %v320, 1e-05
    %v325 = vadd.f32 %v321, 1e-05
    %v326 = vrsqrt.pop %v322
    %v327 = vrsqrt.pop %v323
    %v328 = vrsqrt.pop %v324
    %v329 = vrsqrt.pop %v325
    %v330 = vmul.f32 %v286, %v326
    %v331 = vmul.f32 %v287, %v327
    %v332 = vmul.f32 %v288, %v328
    %v333 = vmul.f32 %v289, %v329
    %v334 = vld [vmem:[%s2] sm:$0xf]
    %v336 = vlaneseq
    %v337 = vshrl.u32 %v336, 7
    %v338 = vsub.s32 0, %v337
    %v339 = vrot.slane %v334, %v338
    %v340 = vlaneseq
    %v341 = vshrl.u32 %v340, 7
    %v342 = vsub.s32 1, %v341
    %v343 = vrot.slane %v334, %v342
    %v344 = vlaneseq
    %v345 = vshrl.u32 %v344, 7
    %v346 = vsub.s32 2, %v345
    %v347 = vrot.slane %v334, %v346
    %v348 = vlaneseq
    %v349 = vshrl.u32 %v348, 7
    %v350 = vsub.s32 3, %v349
    %v351 = vrot.slane %v334, %v350
    %v356 = vmul.f32 %v330, %v339
    %v357 = vmul.f32 %v331, %v343
    %v358 = vmul.f32 %v332, %v347
    %v359 = vmul.f32 %v333, %v351
    %v360 = vld [vmem:[%s3] sm:$0xf]
    %v362 = vlaneseq
    %v363 = vshrl.u32 %v362, 7
    %v364 = vsub.s32 0, %v363
    %v365 = vrot.slane %v360, %v364
    %v366 = vlaneseq
    %v367 = vshrl.u32 %v366, 7
    %v368 = vsub.s32 1, %v367
    %v369 = vrot.slane %v360, %v368
    %v370 = vlaneseq
    %v371 = vshrl.u32 %v370, 7
    %v372 = vsub.s32 2, %v371
    %v373 = vrot.slane %v360, %v372
    %v374 = vlaneseq
    %v375 = vshrl.u32 %v374, 7
    %v376 = vsub.s32 3, %v375
    %v377 = vrot.slane %v360, %v376
    %v382 = vadd.f32 %v356, %v365
    %v383 = vadd.f32 %v357, %v369
    %v384 = vadd.f32 %v358, %v373
    %v385 = vadd.f32 %v359, %v377
    %v386 = vmax.f32 %v382, 0.0
    %v387 = vmax.f32 %v383, 0.0
    %v388 = vmax.f32 %v384, 0.0
    %v389 = vmax.f32 %v385, 0.0
    %v390 = vpack.c.bf16 %v386, %v386
    %v391 = vpack.c.bf16 %v387, %v387
    %v392 = vpack.c.bf16 %v388, %v388
    %v393 = vpack.c.bf16 %v389, %v389
    %v394 = vld [vmem:[#allocation6] sm:$0xff]
    %v395 = vld [vmem:[#allocation6 + $0x8] sm:$0xf]
    %v396 = vld [vmem:[#allocation6 + $0xc] sm:$0xff]
    %v397 = vld [vmem:[#allocation6 + $0x14] sm:$0xf]
    %v398 = vld [vmem:[#allocation6 + $0x18] sm:$0xff]
    %v399 = vld [vmem:[#allocation6 + $0x20] sm:$0xf]
    %v400 = vld [vmem:[#allocation6 + $0x24] sm:$0xff]
    %v401 = vld [vmem:[#allocation6 + $0x2c] sm:$0xf]
    %v402 = vld [vmem:[#allocation6 + $0x30] sm:$0xff]
    %v403 = vld [vmem:[#allocation6 + $0x38] sm:$0xf]
    %v404 = vld [vmem:[#allocation6 + $0x3c] sm:$0xff]
    %v405 = vld [vmem:[#allocation6 + $0x44] sm:$0xf]
    %v406 = vld [vmem:[#allocation6 + $0x48] sm:$0xff]
    %v407 = vld [vmem:[#allocation6 + $0x50] sm:$0xf]
    %v408 = vld [vmem:[#allocation6 + $0x54] sm:$0xff]
    %v409 = vld [vmem:[#allocation6 + $0x5c] sm:$0xf]
    %v410 = vld [vmem:[#allocation6 + $0x60] sm:$0xff]
    %v411 = vld [vmem:[#allocation6 + $0x68] sm:$0xf]
    %v412 = vld [vmem:[#allocation6 + $0x6c] sm:$0xff]
    %v413 = vld [vmem:[#allocation6 + $0x74] sm:$0xf]
    %v414 = vld [vmem:[#allocation6 + $0x78] sm:$0xff]
    %v415 = vld [vmem:[#allocation6 + $0x80] sm:$0xf]
    %v416 = vld [vmem:[#allocation6 + $0x84] sm:$0xff]
    %v417 = vld [vmem:[#allocation6 + $0x8c] sm:$0xf]
    %v418 = vld [vmem:[#allocation6 + $0x90] sm:$0xff]
    %v419 = vld [vmem:[#allocation6 + $0x98] sm:$0xf]
    %v420 = vld [vmem:[#allocation6 + $0x9c] sm:$0xff]
    %v421 = vld [vmem:[#allocation6 + $0xa4] sm:$0xf]
    %v422 = vld [vmem:[#allocation6 + $0xa8] sm:$0xff]
    %v423 = vld [vmem:[#allocation6 + $0xb0] sm:$0xf]
    %v424 = vld [vmem:[#allocation6 + $0xb4] sm:$0xff]
    %v425 = vld [vmem:[#allocation6 + $0xbc] sm:$0xf]
    %v426 = vld [vmem:[#allocation6 + $0xc0] sm:$0xff]
    %v427 = vld [vmem:[#allocation6 + $0xc8] sm:$0xf]
    %v428 = vld [vmem:[#allocation6 + $0xcc] sm:$0xff]
    %v429 = vld [vmem:[#allocation6 + $0xd4] sm:$0xf]
    %v430 = vld [vmem:[#allocation6 + $0xd8] sm:$0xff]
    %v431 = vld [vmem:[#allocation6 + $0xe0] sm:$0xf]
    %v432 = vld [vmem:[#allocation6 + $0xe4] sm:$0xff]
    %v433 = vld [vmem:[#allocation6 + $0xec] sm:$0xf]
    %v434 = vld [vmem:[#allocation6 + $0xf0] sm:$0xff]
    %v435 = vld [vmem:[#allocation6 + $0xf8] sm:$0xf]
    %v436 = vld [vmem:[#allocation6 + $0xfc] sm:$0xff]
    %v437 = vld [vmem:[#allocation6 + $0x104] sm:$0xf]
    %v438 = vld [vmem:[#allocation6 + $0x108] sm:$0xff]
    %v439 = vld [vmem:[#allocation6 + $0x110] sm:$0xf]
    %v440 = vld [vmem:[#allocation6 + $0x114] sm:$0xff]
    %v441 = vld [vmem:[#allocation6 + $0x11c] sm:$0xf]
    %v442 = vld [vmem:[#allocation6 + $0x120] sm:$0xff]
    %v443 = vld [vmem:[#allocation6 + $0x128] sm:$0xf]
    %v444 = vld [vmem:[#allocation6 + $0x12c] sm:$0xff]
    %v445 = vld [vmem:[#allocation6 + $0x134] sm:$0xf]
    %v446 = vld [vmem:[#allocation6 + $0x138] sm:$0xff]
    %v447 = vld [vmem:[#allocation6 + $0x140] sm:$0xf]
    %v448 = vld [vmem:[#allocation6 + $0x144] sm:$0xff]
    %v449 = vld [vmem:[#allocation6 + $0x14c] sm:$0xf]
    %v450 = vld [vmem:[#allocation6 + $0x150] sm:$0xff]
    %v451 = vld [vmem:[#allocation6 + $0x158] sm:$0xf]
    %v452 = vld [vmem:[#allocation6 + $0x15c] sm:$0xff]
    %v453 = vld [vmem:[#allocation6 + $0x164] sm:$0xf]
    %v454 = vld [vmem:[#allocation6 + $0x168] sm:$0xff]
    %v455 = vld [vmem:[#allocation6 + $0x170] sm:$0xf]
    %v456 = vld [vmem:[#allocation6 + $0x174] sm:$0xff]
    %v457 = vld [vmem:[#allocation6 + $0x17c] sm:$0xf]
    %v458 = vld [vmem:[#allocation6 + $0x180] sm:$0xff]
    %v459 = vld [vmem:[#allocation6 + $0x188] sm:$0xf]
    %v460 = vld [vmem:[#allocation6 + $0x18c] sm:$0xff]
    %v461 = vld [vmem:[#allocation6 + $0x194] sm:$0xf]
    %v462 = vld [vmem:[#allocation6 + $0x198] sm:$0xff]
    %v463 = vld [vmem:[#allocation6 + $0x1a0] sm:$0xf]
    %v464 = vld [vmem:[#allocation6 + $0x1a4] sm:$0xff]
    %v465 = vld [vmem:[#allocation6 + $0x1ac] sm:$0xf]
    %v466 = vld [vmem:[#allocation6 + $0x1b0] sm:$0xff]
    %v467 = vld [vmem:[#allocation6 + $0x1b8] sm:$0xf]
    %v468 = vld [vmem:[#allocation6 + $0x1bc] sm:$0xff]
    %v469 = vld [vmem:[#allocation6 + $0x1c4] sm:$0xf]
    %v470 = vld [vmem:[#allocation6 + $0x1c8] sm:$0xff]
    %v471 = vld [vmem:[#allocation6 + $0x1d0] sm:$0xf]
    %v472 = vld [vmem:[#allocation6 + $0x1d4] sm:$0xff]
    %v473 = vld [vmem:[#allocation6 + $0x1dc] sm:$0xf]
    %v474 = vld [vmem:[#allocation6 + $0x1e0] sm:$0xff]
    %v475 = vld [vmem:[#allocation6 + $0x1e8] sm:$0xf]
    %v476 = vld [vmem:[#allocation6 + $0x1ec] sm:$0xff]
    %v477 = vld [vmem:[#allocation6 + $0x1f4] sm:$0xf]
    %v478 = vld [vmem:[#allocation6 + $0x1f8] sm:$0xff]
    %v479 = vld [vmem:[#allocation6 + $0x200] sm:$0xf]
    %v480 = vld [vmem:[#allocation6 + $0x204] sm:$0xff]
    %v481 = vld [vmem:[#allocation6 + $0x20c] sm:$0xf]
    %v482 = vld [vmem:[#allocation6 + $0x210] sm:$0xff]
    %v483 = vld [vmem:[#allocation6 + $0x218] sm:$0xf]
    %v484 = vld [vmem:[#allocation6 + $0x21c] sm:$0xff]
    %v485 = vld [vmem:[#allocation6 + $0x224] sm:$0xf]
    %v486 = vld [vmem:[#allocation6 + $0x228] sm:$0xff]
    %v487 = vld [vmem:[#allocation6 + $0x230] sm:$0xf]
    %v488 = vld [vmem:[#allocation6 + $0x234] sm:$0xff]
    %v489 = vld [vmem:[#allocation6 + $0x23c] sm:$0xf]
    %v490 = vld [vmem:[#allocation6 + $0x240] sm:$0xff]
    %v491 = vld [vmem:[#allocation6 + $0x248] sm:$0xf]
    %v492 = vld [vmem:[#allocation6 + $0x24c] sm:$0xff]
    %v493 = vld [vmem:[#allocation6 + $0x254] sm:$0xf]
    %v494 = vld [vmem:[#allocation6 + $0x258] sm:$0xff]
    %v495 = vld [vmem:[#allocation6 + $0x260] sm:$0xf]
    %v496 = vld [vmem:[#allocation6 + $0x264] sm:$0xff]
    %v497 = vld [vmem:[#allocation6 + $0x26c] sm:$0xf]
    %v498 = vld [vmem:[#allocation6 + $0x270] sm:$0xff]
    %v499 = vld [vmem:[#allocation6 + $0x278] sm:$0xf]
    %v500 = vld [vmem:[#allocation6 + $0x27c] sm:$0xff]
    %v501 = vld [vmem:[#allocation6 + $0x284] sm:$0xf]
    %v502 = vld [vmem:[#allocation6 + $0x288] sm:$0xff]
    %v503 = vld [vmem:[#allocation6 + $0x290] sm:$0xf]
    %v504 = vld [vmem:[#allocation6 + $0x294] sm:$0xff]
    %v505 = vld [vmem:[#allocation6 + $0x29c] sm:$0xf]
    %v506 = vld [vmem:[#allocation6 + $0x2a0] sm:$0xff]
    %v507 = vld [vmem:[#allocation6 + $0x2a8] sm:$0xf]
    %v508 = vld [vmem:[#allocation6 + $0x2ac] sm:$0xff]
    %v509 = vld [vmem:[#allocation6 + $0x2b4] sm:$0xf]
    %v510 = vld [vmem:[#allocation6 + $0x2b8] sm:$0xff]
    %v511 = vld [vmem:[#allocation6 + $0x2c0] sm:$0xf]
    %v512 = vld [vmem:[#allocation6 + $0x2c4] sm:$0xff]
    %v513 = vld [vmem:[#allocation6 + $0x2cc] sm:$0xf]
    %v514 = vld [vmem:[#allocation6 + $0x2d0] sm:$0xff]
    %v515 = vld [vmem:[#allocation6 + $0x2d8] sm:$0xf]
    %v516 = vld [vmem:[#allocation6 + $0x2dc] sm:$0xff]
    %v517 = vld [vmem:[#allocation6 + $0x2e4] sm:$0xf]
    %v518 = vld [vmem:[#allocation6 + $0x2e8] sm:$0xff]
    %v519 = vld [vmem:[#allocation6 + $0x2f0] sm:$0xf]
    %v520 = vld [vmem:[#allocation6 + $0x2f4] sm:$0xff]
    %v521 = vld [vmem:[#allocation6 + $0x2fc] sm:$0xf]
    %v522 = vld [vmem:[%s5] sm:$0x7]
    %v524 = vlaneseq
    %v525 = vshrl.u32 %v524, 7
    %v526 = vsub.s32 0, %v525
    %v527 = vrot.slane %v522, %v526
    %v528 = vlaneseq
    %v529 = vshrl.u32 %v528, 7
    %v530 = vsub.s32 1, %v529
    %v531 = vrot.slane %v522, %v530
    %v532 = vlaneseq
    %v533 = vshrl.u32 %v532, 7
    %v534 = vsub.s32 2, %v533
    %v535 = vrot.slane %v522, %v534
    %v667 = vunpack.c.l.b16 %v394
    %v668 = vunpack.c.h.b16 %v394
    %v669 = vunpack.c.l.b16 %v395
    %v670 = vunpack.c.l.b16 %v396
    %v671 = vunpack.c.h.b16 %v396
    %v672 = vunpack.c.l.b16 %v397
    %v673 = vunpack.c.l.b16 %v398
    %v674 = vunpack.c.h.b16 %v398
    %v675 = vunpack.c.l.b16 %v399
    %v676 = vunpack.c.l.b16 %v400
    %v677 = vunpack.c.h.b16 %v400
    %v678 = vunpack.c.l.b16 %v401
    %v679 = vunpack.c.l.b16 %v402
    %v680 = vunpack.c.h.b16 %v402
    %v681 = vunpack.c.l.b16 %v403
    %v682 = vunpack.c.l.b16 %v404
    %v683 = vunpack.c.h.b16 %v404
    %v684 = vunpack.c.l.b16 %v405
    %v685 = vunpack.c.l.b16 %v406
    %v686 = vunpack.c.h.b16 %v406
    %v687 = vunpack.c.l.b16 %v407
    %v688 = vunpack.c.l.b16 %v408
    %v689 = vunpack.c.h.b16 %v408
    %v690 = vunpack.c.l.b16 %v409
    %v691 = vunpack.c.l.b16 %v410
    %v692 = vunpack.c.h.b16 %v410
    %v693 = vunpack.c.l.b16 %v411
    %v694 = vunpack.c.l.b16 %v412
    %v695 = vunpack.c.h.b16 %v412
    %v696 = vunpack.c.l.b16 %v413
    %v697 = vunpack.c.l.b16 %v414
    %v698 = vunpack.c.h.b16 %v414
    %v699 = vunpack.c.l.b16 %v415
    %v700 = vunpack.c.l.b16 %v416
    %v701 = vunpack.c.h.b16 %v416
    %v702 = vunpack.c.l.b16 %v417
    %v703 = vunpack.c.l.b16 %v418
    %v704 = vunpack.c.h.b16 %v418
    %v705 = vunpack.c.l.b16 %v419
    %v706 = vunpack.c.l.b16 %v420
    %v707 = vunpack.c.h.b16 %v420
    %v708 = vunpack.c.l.b16 %v421
    %v709 = vunpack.c.l.b16 %v422
    %v710 = vunpack.c.h.b16 %v422
    %v711 = vunpack.c.l.b16 %v423
    %v712 = vunpack.c.l.b16 %v424
    %v713 = vunpack.c.h.b16 %v424
    %v714 = vunpack.c.l.b16 %v425
    %v715 = vunpack.c.l.b16 %v426
    %v716 = vunpack.c.h.b16 %v426
    %v717 = vunpack.c.l.b16 %v427
    %v718 = vunpack.c.l.b16 %v428
    %v719 = vunpack.c.h.b16 %v428
    %v720 = vunpack.c.l.b16 %v429
    %v721 = vunpack.c.l.b16 %v430
    %v722 = vunpack.c.h.b16 %v430
    %v723 = vunpack.c.l.b16 %v431
    %v724 = vunpack.c.l.b16 %v432
    %v725 = vunpack.c.h.b16 %v432
    %v726 = vunpack.c.l.b16 %v433
    %v727 = vunpack.c.l.b16 %v434
    %v728 = vunpack.c.h.b16 %v434
    %v729 = vunpack.c.l.b16 %v435
    %v730 = vunpack.c.l.b16 %v436
    %v731 = vunpack.c.h.b16 %v436
    %v732 = vunpack.c.l.b16 %v437
    %v733 = vunpack.c.l.b16 %v438
    %v734 = vunpack.c.h.b16 %v438
    %v735 = vunpack.c.l.b16 %v439
    %v736 = vunpack.c.l.b16 %v440
    %v737 = vunpack.c.h.b16 %v440
    %v738 = vunpack.c.l.b16 %v441
    %v739 = vunpack.c.l.b16 %v442
    %v740 = vunpack.c.h.b16 %v442
    %v741 = vunpack.c.l.b16 %v443
    %v742 = vunpack.c.l.b16 %v444
    %v743 = vunpack.c.h.b16 %v444
    %v744 = vunpack.c.l.b16 %v445
    %v745 = vunpack.c.l.b16 %v446
    %v746 = vunpack.c.h.b16 %v446
    %v747 = vunpack.c.l.b16 %v447
    %v748 = vunpack.c.l.b16 %v448
    %v749 = vunpack.c.h.b16 %v448
    %v750 = vunpack.c.l.b16 %v449
    %v751 = vunpack.c.l.b16 %v450
    %v752 = vunpack.c.h.b16 %v450
    %v753 = vunpack.c.l.b16 %v451
    %v754 = vunpack.c.l.b16 %v452
    %v755 = vunpack.c.h.b16 %v452
    %v756 = vunpack.c.l.b16 %v453
    %v757 = vunpack.c.l.b16 %v454
    %v758 = vunpack.c.h.b16 %v454
    %v759 = vunpack.c.l.b16 %v455
    %v760 = vunpack.c.l.b16 %v456
    %v761 = vunpack.c.h.b16 %v456
    %v762 = vunpack.c.l.b16 %v457
    %v763 = vunpack.c.l.b16 %v458
    %v764 = vunpack.c.h.b16 %v458
    %v765 = vunpack.c.l.b16 %v459
    %v766 = vunpack.c.l.b16 %v460
    %v767 = vunpack.c.h.b16 %v460
    %v768 = vunpack.c.l.b16 %v461
    %v769 = vunpack.c.l.b16 %v462
    %v770 = vunpack.c.h.b16 %v462
    %v771 = vunpack.c.l.b16 %v463
    %v772 = vunpack.c.l.b16 %v464
    %v773 = vunpack.c.h.b16 %v464
    %v774 = vunpack.c.l.b16 %v465
    %v775 = vunpack.c.l.b16 %v466
    %v776 = vunpack.c.h.b16 %v466
    %v777 = vunpack.c.l.b16 %v467
    %v778 = vunpack.c.l.b16 %v468
    %v779 = vunpack.c.h.b16 %v468
    %v780 = vunpack.c.l.b16 %v469
    %v781 = vunpack.c.l.b16 %v470
    %v782 = vunpack.c.h.b16 %v470
    %v783 = vunpack.c.l.b16 %v471
    %v784 = vunpack.c.l.b16 %v472
    %v785 = vunpack.c.h.b16 %v472
    %v786 = vunpack.c.l.b16 %v473
    %v787 = vunpack.c.l.b16 %v474
    %v788 = vunpack.c.h.b16 %v474
    %v789 = vunpack.c.l.b16 %v475
    %v790 = vunpack.c.l.b16 %v476
    %v791 = vunpack.c.h.b16 %v476
    %v792 = vunpack.c.l.b16 %v477
    %v793 = vunpack.c.l.b16 %v478
    %v794 = vunpack.c.h.b16 %v478
    %v795 = vunpack.c.l.b16 %v479
    %v796 = vunpack.c.l.b16 %v480
    %v797 = vunpack.c.h.b16 %v480
    %v798 = vunpack.c.l.b16 %v481
    %v799 = vunpack.c.l.b16 %v482
    %v800 = vunpack.c.h.b16 %v482
    %v801 = vunpack.c.l.b16 %v483
    %v802 = vunpack.c.l.b16 %v484
    %v803 = vunpack.c.h.b16 %v484
    %v804 = vunpack.c.l.b16 %v485
    %v805 = vunpack.c.l.b16 %v486
    %v806 = vunpack.c.h.b16 %v486
    %v807 = vunpack.c.l.b16 %v487
    %v808 = vunpack.c.l.b16 %v488
    %v809 = vunpack.c.h.b16 %v488
    %v810 = vunpack.c.l.b16 %v489
    %v811 = vunpack.c.l.b16 %v490
    %v812 = vunpack.c.h.b16 %v490
    %v813 = vunpack.c.l.b16 %v491
    %v814 = vunpack.c.l.b16 %v492
    %v815 = vunpack.c.h.b16 %v492
    %v816 = vunpack.c.l.b16 %v493
    %v817 = vunpack.c.l.b16 %v494
    %v818 = vunpack.c.h.b16 %v494
    %v819 = vunpack.c.l.b16 %v495
    %v820 = vunpack.c.l.b16 %v496
    %v821 = vunpack.c.h.b16 %v496
    %v822 = vunpack.c.l.b16 %v497
    %v823 = vunpack.c.l.b16 %v498
    %v824 = vunpack.c.h.b16 %v498
    %v825 = vunpack.c.l.b16 %v499
    %v826 = vunpack.c.l.b16 %v500
    %v827 = vunpack.c.h.b16 %v500
    %v828 = vunpack.c.l.b16 %v501
    %v829 = vunpack.c.l.b16 %v502
    %v830 = vunpack.c.h.b16 %v502
    %v831 = vunpack.c.l.b16 %v503
    %v832 = vunpack.c.l.b16 %v504
    %v833 = vunpack.c.h.b16 %v504
    %v834 = vunpack.c.l.b16 %v505
    %v835 = vunpack.c.l.b16 %v506
    %v836 = vunpack.c.h.b16 %v506
    %v837 = vunpack.c.l.b16 %v507
    %v838 = vunpack.c.l.b16 %v508
    %v839 = vunpack.c.h.b16 %v508
    %v840 = vunpack.c.l.b16 %v509
    %v841 = vunpack.c.l.b16 %v510
    %v842 = vunpack.c.h.b16 %v510
    %v843 = vunpack.c.l.b16 %v511
    %v844 = vunpack.c.l.b16 %v512
    %v845 = vunpack.c.h.b16 %v512
    %v846 = vunpack.c.l.b16 %v513
    %v847 = vunpack.c.l.b16 %v514
    %v848 = vunpack.c.h.b16 %v514
    %v849 = vunpack.c.l.b16 %v515
    %v850 = vunpack.c.l.b16 %v516
    %v851 = vunpack.c.h.b16 %v516
    %v852 = vunpack.c.l.b16 %v517
    %v853 = vunpack.c.l.b16 %v518
    %v854 = vunpack.c.h.b16 %v518
    %v855 = vunpack.c.l.b16 %v519
    %v856 = vunpack.c.l.b16 %v520
    %v857 = vunpack.c.h.b16 %v520
    %v858 = vunpack.c.l.b16 %v521
    %v859 = vpack.c.b16 %v670, %v667
    %v860 = vpack.c.b16 %v671, %v668
    %v861 = vpack.c.b16 %v672, %v669
    %v862 = vpack.c.b16 %v676, %v673
    %v863 = vpack.c.b16 %v677, %v674
    %v864 = vpack.c.b16 %v678, %v675
    %v865 = vpack.c.b16 %v682, %v679
    %v866 = vpack.c.b16 %v683, %v680
    %v867 = vpack.c.b16 %v684, %v681
    %v868 = vpack.c.b16 %v688, %v685
    %v869 = vpack.c.b16 %v689, %v686
    %v870 = vpack.c.b16 %v690, %v687
    %v871 = vpack.c.b16 %v694, %v691
    %v872 = vpack.c.b16 %v695, %v692
    %v873 = vpack.c.b16 %v696, %v693
    %v874 = vpack.c.b16 %v700, %v697
    %v875 = vpack.c.b16 %v701, %v698
    %v876 = vpack.c.b16 %v702, %v699
    %v877 = vpack.c.b16 %v706, %v703
    %v878 = vpack.c.b16 %v707, %v704
    %v879 = vpack.c.b16 %v708, %v705
    %v880 = vpack.c.b16 %v712, %v709
    %v881 = vpack.c.b16 %v713, %v710
    %v882 = vpack.c.b16 %v714, %v711
    %v883 = vpack.c.b16 %v718, %v715
    %v884 = vpack.c.b16 %v719, %v716
    %v885 = vpack.c.b16 %v720, %v717
    %v886 = vpack.c.b16 %v724, %v721
    %v887 = vpack.c.b16 %v725, %v722
    %v888 = vpack.c.b16 %v726, %v723
    %v889 = vpack.c.b16 %v730, %v727
    %v890 = vpack.c.b16 %v731, %v728
    %v891 = vpack.c.b16 %v732, %v729
    %v892 = vpack.c.b16 %v736, %v733
    %v893 = vpack.c.b16 %v737, %v734
    %v894 = vpack.c.b16 %v738, %v735
    %v895 = vpack.c.b16 %v742, %v739
    %v896 = vpack.c.b16 %v743, %v740
    %v897 = vpack.c.b16 %v744, %v741
    %v898 = vpack.c.b16 %v748, %v745
    %v899 = vpack.c.b16 %v749, %v746
    %v900 = vpack.c.b16 %v750, %v747
    %v901 = vpack.c.b16 %v754, %v751
    %v902 = vpack.c.b16 %v755, %v752
    %v903 = vpack.c.b16 %v756, %v753
    %v904 = vpack.c.b16 %v760, %v757
    %v905 = vpack.c.b16 %v761, %v758
    %v906 = vpack.c.b16 %v762, %v759
    %v907 = vpack.c.b16 %v766, %v763
    %v908 = vpack.c.b16 %v767, %v764
    %v909 = vpack.c.b16 %v768, %v765
    %v910 = vpack.c.b16 %v772, %v769
    %v911 = vpack.c.b16 %v773, %v770
    %v912 = vpack.c.b16 %v774, %v771
    %v913 = vpack.c.b16 %v778, %v775
    %v914 = vpack.c.b16 %v779, %v776
    %v915 = vpack.c.b16 %v780, %v777
    %v916 = vpack.c.b16 %v784, %v781
    %v917 = vpack.c.b16 %v785, %v782
    %v918 = vpack.c.b16 %v786, %v783
    %v919 = vpack.c.b16 %v790, %v787
    %v920 = vpack.c.b16 %v791, %v788
    %v921 = vpack.c.b16 %v792, %v789
    %v922 = vpack.c.b16 %v796, %v793
    %v923 = vpack.c.b16 %v797, %v794
    %v924 = vpack.c.b16 %v798, %v795
    %v925 = vpack.c.b16 %v802, %v799
    %v926 = vpack.c.b16 %v803, %v800
    %v927 = vpack.c.b16 %v804, %v801
    %v928 = vpack.c.b16 %v808, %v805
    %v929 = vpack.c.b16 %v809, %v806
    %v930 = vpack.c.b16 %v810, %v807
    %v931 = vpack.c.b16 %v814, %v811
    %v932 = vpack.c.b16 %v815, %v812
    %v933 = vpack.c.b16 %v816, %v813
    %v934 = vpack.c.b16 %v820, %v817
    %v935 = vpack.c.b16 %v821, %v818
    %v936 = vpack.c.b16 %v822, %v819
    %v937 = vpack.c.b16 %v826, %v823
    %v938 = vpack.c.b16 %v827, %v824
    %v939 = vpack.c.b16 %v828, %v825
    %v940 = vpack.c.b16 %v832, %v829
    %v941 = vpack.c.b16 %v833, %v830
    %v942 = vpack.c.b16 %v834, %v831
    %v943 = vpack.c.b16 %v838, %v835
    %v944 = vpack.c.b16 %v839, %v836
    %v945 = vpack.c.b16 %v840, %v837
    %v946 = vpack.c.b16 %v844, %v841
    %v947 = vpack.c.b16 %v845, %v842
    %v948 = vpack.c.b16 %v846, %v843
    %v949 = vpack.c.b16 %v850, %v847
    %v950 = vpack.c.b16 %v851, %v848
    %v951 = vpack.c.b16 %v852, %v849
    %v952 = vpack.c.b16 %v856, %v853
    %v953 = vpack.c.b16 %v857, %v854
    %v954 = vpack.c.b16 %v858, %v855
    %1051 = vmatprep.subr.bf16.mxu0 %v860
    %1052 = vmatpush1.bf16.msra.mxu0 %v859
    %1053 = vmatprep.subr.bf16.mxu0 %v863
    %1054 = vmatpush1.bf16.msra.mxu0 %v862
    %1055 = vmatprep.subr.bf16.mxu0 %v866
    %1056 = vmatpush1.bf16.msra.mxu0 %v865
    %1057 = vmatprep.subr.bf16.mxu0 %v869
    %1058 = vmatpush1.bf16.msra.mxu0 %v868
    %1059 = vmatprep.subr.bf16.mxu0 %v872
    %1060 = vmatpush1.bf16.msra.mxu0 %v871
    %1061 = vmatprep.subr.bf16.mxu0 %v875
    %1062 = vmatpush1.bf16.msra.mxu0 %v874
    %1063 = vmatprep.subr.bf16.mxu0 %v878
    %1064 = vmatpush1.bf16.msra.mxu0 %v877
    %1065 = vmatprep.subr.bf16.mxu0 %v881
    %1066 = vmatpush1.bf16.msra.mxu0 %v880
    %1067 = vmatprep.subr.bf16.mxu0 %v884
    %1068 = vmatpush1.bf16.msra.mxu0 %v883
    %1069 = vmatprep.subr.bf16.mxu0 %v887
    %1070 = vmatpush1.bf16.msra.mxu0 %v886
    %1071 = vmatprep.subr.bf16.mxu0 %v890
    %1072 = vmatpush1.bf16.msra.mxu0 %v889
    %1073 = vmatprep.subr.bf16.mxu0 %v893
    %1074 = vmatpush1.bf16.msra.mxu0 %v892
    %1075 = vmatprep.subr.bf16.mxu0 %v896
    %1076 = vmatpush1.bf16.msra.mxu0 %v895
    %1077 = vmatprep.subr.bf16.mxu0 %v899
    %1078 = vmatpush1.bf16.msra.mxu0 %v898
    %1079 = vmatprep.subr.bf16.mxu0 %v902
    %1080 = vmatpush1.bf16.msra.mxu0 %v901
    %1081 = vmatprep.subr.bf16.mxu0 %v905
    %1082 = vmatpush1.bf16.msra.mxu0 %v904
    %1083 = vmatprep.mubr.bf16.mxu0 %v391
    %1084 = vmatmul.mubr.bf16.gmra.mrb[0].mxu0 %v390
    %v1085 = vpop.f32.mrb[0].mxu0
    %v1086 = vadd.f32 %v527, %v1085
    %v1087 = vpop.f32.mrb[0].mxu0
    %v1088 = vadd.f32 %v531, %v1087
    %v1089 = vpop.f32.mrb[0].mxu0
    %v1090 = vpop.f32.mrb[0].mxu0
    %1091 = vdwg.mxu0
    %1092 = vmatprep.subr.bf16.mxu0 %v908
    %1093 = vmatpush1.bf16.msra.mxu0 %v907
    %1094 = vmatprep.subr.bf16.mxu0 %v911
    %1095 = vmatpush1.bf16.msra.mxu0 %v910
    %1096 = vmatprep.subr.bf16.mxu0 %v914
    %1097 = vmatpush1.bf16.msra.mxu0 %v913
    %1098 = vmatprep.subr.bf16.mxu0 %v917
    %1099 = vmatpush1.bf16.msra.mxu0 %v916
    %1100 = vmatprep.subr.bf16.mxu0 %v920
    %1101 = vmatpush1.bf16.msra.mxu0 %v919
    %1102 = vmatprep.subr.bf16.mxu0 %v923
    %1103 = vmatpush1.bf16.msra.mxu0 %v922
    %1104 = vmatprep.subr.bf16.mxu0 %v926
    %1105 = vmatpush1.bf16.msra.mxu0 %v925
    %1106 = vmatprep.subr.bf16.mxu0 %v929
    %1107 = vmatpush1.bf16.msra.mxu0 %v928
    %1108 = vmatprep.subr.bf16.mxu0 %v932
    %1109 = vmatpush1.bf16.msra.mxu0 %v931
    %1110 = vmatprep.subr.bf16.mxu0 %v935
    %1111 = vmatpush1.bf16.msra.mxu0 %v934
    %1112 = vmatprep.subr.bf16.mxu0 %v938
    %1113 = vmatpush1.bf16.msra.mxu0 %v937
    %1114 = vmatprep.subr.bf16.mxu0 %v941
    %1115 = vmatpush1.bf16.msra.mxu0 %v940
    %1116 = vmatprep.subr.bf16.mxu0 %v944
    %1117 = vmatpush1.bf16.msra.mxu0 %v943
    %1118 = vmatprep.subr.bf16.mxu0 %v947
    %1119 = vmatpush1.bf16.msra.mxu0 %v946
    %1120 = vmatprep.subr.bf16.mxu0 %v950
    %1121 = vmatpush1.bf16.msra.mxu0 %v949
    %1122 = vmatprep.subr.bf16.mxu0 %v953
    %1123 = vmatpush1.bf16.msra.mxu0 %v952
    %1124 = vmatprep.mubr.bf16.mxu0 %v393
    %1125 = vmatmul.mubr.bf16.gmra.mrb[0].mxu0 %v392
    %v1126 = vpop.f32.mrb[0].mxu0
    %v1127 = vadd.f32 %v1086, %v1126
    %v1128 = vpop.f32.mrb[0].mxu0
    %v1129 = vadd.f32 %v1088, %v1128
    %v1130 = vpop.f32.mrb[0].mxu0
    %v1131 = vpop.f32.mrb[0].mxu0
    %1132 = vdwg.mxu0
    %1133 = vmatprep.subr.bf16.mxu0 0
    %1134 = vmatpush1.bf16.msra.mxu0 %v861
    %1135 = vmatprep.subr.bf16.mxu0 0
    %1136 = vmatpush1.bf16.msra.mxu0 %v864
    %1137 = vmatprep.subr.bf16.mxu0 0
    %1138 = vmatpush1.bf16.msra.mxu0 %v867
    %1139 = vmatprep.subr.bf16.mxu0 0
    %1140 = vmatpush1.bf16.msra.mxu0 %v870
    %1141 = vmatprep.subr.bf16.mxu0 0
    %1142 = vmatpush1.bf16.msra.mxu0 %v873
    %1143 = vmatprep.subr.bf16.mxu0 0
    %1144 = vmatpush1.bf16.msra.mxu0 %v876
    %1145 = vmatprep.subr.bf16.mxu0 0
    %1146 = vmatpush1.bf16.msra.mxu0 %v879
    %1147 = vmatprep.subr.bf16.mxu0 0
    %1148 = vmatpush1.bf16.msra.mxu0 %v882
    %1149 = vmatprep.subr.bf16.mxu0 0
    %1150 = vmatpush1.bf16.msra.mxu0 %v885
    %1151 = vmatprep.subr.bf16.mxu0 0
    %1152 = vmatpush1.bf16.msra.mxu0 %v888
    %1153 = vmatprep.subr.bf16.mxu0 0
    %1154 = vmatpush1.bf16.msra.mxu0 %v891
    %1155 = vmatprep.subr.bf16.mxu0 0
    %1156 = vmatpush1.bf16.msra.mxu0 %v894
    %1157 = vmatprep.subr.bf16.mxu0 0
    %1158 = vmatpush1.bf16.msra.mxu0 %v897
    %1159 = vmatprep.subr.bf16.mxu0 0
    %1160 = vmatpush1.bf16.msra.mxu0 %v900
    %1161 = vmatprep.subr.bf16.mxu0 0
    %1162 = vmatpush1.bf16.msra.mxu0 %v903
    %1163 = vmatprep.subr.bf16.mxu0 0
    %1164 = vmatpush1.bf16.msra.mxu0 %v906
    %1165 = vmatprep.mubr.bf16.mxu0 %v391
    %1166 = vmatmul.mubr.bf16.gmra.mrb[0].mxu0 %v390
    %v1167 = vpop.f32.mrb[0].mxu0
    %v1168 = vadd.f32 %v535, %v1167
    %v1169 = vpop.f32.mrb[0].mxu0
    %v1170 = vpop.f32.mrb[0].mxu0
    %v1171 = vpop.f32.mrb[0].mxu0
    %1172 = vdwg.mxu0
    %1173 = vmatprep.subr.bf16.mxu0 0
    %1174 = vmatpush1.bf16.msra.mxu0 %v909
    %1175 = vmatprep.subr.bf16.mxu0 0
    %1176 = vmatpush1.bf16.msra.mxu0 %v912
    %1177 = vmatprep.subr.bf16.mxu0 0
    %1178 = vmatpush1.bf16.msra.mxu0 %v915
    %1179 = vmatprep.subr.bf16.mxu0 0
    %1180 = vmatpush1.bf16.msra.mxu0 %v918
    %1181 = vmatprep.subr.bf16.mxu0 0
    %1182 = vmatpush1.bf16.msra.mxu0 %v921
    %1183 = vmatprep.subr.bf16.mxu0 0
    %1184 = vmatpush1.bf16.msra.mxu0 %v924
    %1185 = vmatprep.subr.bf16.mxu0 0
    %1186 = vmatpush1.bf16.msra.mxu0 %v927
    %1187 = vmatprep.subr.bf16.mxu0 0
    %1188 = vmatpush1.bf16.msra.mxu0 %v930
    %1189 = vmatprep.subr.bf16.mxu0 0
    %1190 = vmatpush1.bf16.msra.mxu0 %v933
    %1191 = vmatprep.subr.bf16.mxu0 0
    %1192 = vmatpush1.bf16.msra.mxu0 %v936
    %1193 = vmatprep.subr.bf16.mxu0 0
    %1194 = vmatpush1.bf16.msra.mxu0 %v939
    %1195 = vmatprep.subr.bf16.mxu0 0
    %1196 = vmatpush1.bf16.msra.mxu0 %v942
    %1197 = vmatprep.subr.bf16.mxu0 0
    %1198 = vmatpush1.bf16.msra.mxu0 %v945
    %1199 = vmatprep.subr.bf16.mxu0 0
    %1200 = vmatpush1.bf16.msra.mxu0 %v948
    %1201 = vmatprep.subr.bf16.mxu0 0
    %1202 = vmatpush1.bf16.msra.mxu0 %v951
    %1203 = vmatprep.subr.bf16.mxu0 0
    %1204 = vmatpush1.bf16.msra.mxu0 %v954
    %1205 = vmatprep.mubr.bf16.mxu0 %v393
    %1206 = vmatmul.mubr.bf16.gmra.mrb[0].mxu0 %v392
    %v1207 = vpop.f32.mrb[0].mxu0
    %v1208 = vadd.f32 %v1168, %v1207
    %v1209 = vpop.f32.mrb[0].mxu0
    %v1210 = vpop.f32.mrb[0].mxu0
    %v1211 = vpop.f32.mrb[0].mxu0
    %1212 = vdwg.mxu0
    %v1213 = vmax.f32 %v1127, 0.0
    %v1214 = vmax.f32 %v1129, 0.0
    %v1215 = vmax.f32 %v1208, 0.0
    %v1216 = vpack.c.bf16 %v1213, %v1213
    %v1217 = vpack.c.bf16 %v1214, %v1214
    %v1218 = vpack.c.bf16 %v1215, %v1215
    %v1219 = vld [vmem:[#allocation7] sm:$0xf]
    %v1220 = vld [vmem:[#allocation7 + $0x4] sm:$0xf]
    %v1221 = vld [vmem:[#allocation7 + $0x8] sm:$0xf]
    %v1222 = vld [vmem:[#allocation7 + $0xc] sm:$0xf]
    %v1223 = vld [vmem:[#allocation7 + $0x10] sm:$0xf]
    %v1224 = vld [vmem:[#allocation7 + $0x14] sm:$0xf]
    %v1225 = vld [vmem:[#allocation7 + $0x18] sm:$0xf]
    %v1226 = vld [vmem:[#allocation7 + $0x1c] sm:$0xf]
    %v1227 = vld [vmem:[#allocation7 + $0x20] sm:$0xf]
    %v1228 = vld [vmem:[#allocation7 + $0x24] sm:$0xf]
    %v1229 = vld [vmem:[#allocation7 + $0x28] sm:$0xf]
    %v1230 = vld [vmem:[#allocation7 + $0x2c] sm:$0xf]
    %v1231 = vld [vmem:[#allocation7 + $0x30] sm:$0xf]
    %v1232 = vld [vmem:[#allocation7 + $0x34] sm:$0xf]
    %v1233 = vld [vmem:[#allocation7 + $0x38] sm:$0xf]
    %v1234 = vld [vmem:[#allocation7 + $0x3c] sm:$0xf]
    %v1235 = vld [vmem:[#allocation7 + $0x40] sm:$0xf]
    %v1236 = vld [vmem:[#allocation7 + $0x44] sm:$0xf]
    %v1237 = vld [vmem:[#allocation7 + $0x48] sm:$0xf]
    %v1238 = vld [vmem:[#allocation7 + $0x4c] sm:$0xf]
    %v1239 = vld [vmem:[#allocation7 + $0x50] sm:$0xf]
    %v1240 = vld [vmem:[#allocation7 + $0x54] sm:$0xf]
    %v1241 = vld [vmem:[#allocation7 + $0x58] sm:$0xf]
    %v1242 = vld [vmem:[#allocation7 + $0x5c] sm:$0xf]
    %v1243 = vld [vmem:[#allocation7 + $0x60] sm:$0xf]
    %v1244 = vld [vmem:[#allocation7 + $0x64] sm:$0xf]
    %v1245 = vld [vmem:[#allocation7 + $0x68] sm:$0xf]
    %v1246 = vld [vmem:[#allocation7 + $0x6c] sm:$0xf]
    %v1247 = vld [vmem:[#allocation7 + $0x70] sm:$0xf]
    %v1248 = vld [vmem:[#allocation7 + $0x74] sm:$0xf]
    %v1249 = vld [vmem:[#allocation7 + $0x78] sm:$0xf]
    %v1250 = vld [vmem:[#allocation7 + $0x7c] sm:$0xf]
    %v1251 = vld [vmem:[#allocation7 + $0x80] sm:$0xf]
    %v1252 = vld [vmem:[#allocation7 + $0x84] sm:$0xf]
    %v1253 = vld [vmem:[#allocation7 + $0x88] sm:$0xf]
    %v1254 = vld [vmem:[#allocation7 + $0x8c] sm:$0xf]
    %v1255 = vld [vmem:[#allocation7 + $0x90] sm:$0xf]
    %v1256 = vld [vmem:[#allocation7 + $0x94] sm:$0xf]
    %v1257 = vld [vmem:[#allocation7 + $0x98] sm:$0xf]
    %v1258 = vld [vmem:[#allocation7 + $0x9c] sm:$0xf]
    %v1259 = vld [vmem:[#allocation7 + $0xa0] sm:$0xf]
    %v1260 = vld [vmem:[#allocation7 + $0xa4] sm:$0xf]
    %v1261 = vld [vmem:[#allocation7 + $0xa8] sm:$0xf]
    %v1262 = vld [vmem:[#allocation7 + $0xac] sm:$0xf]
    %v1263 = vld [vmem:[#allocation7 + $0xb0] sm:$0xf]
    %v1264 = vld [vmem:[#allocation7 + $0xb4] sm:$0xf]
    %v1265 = vld [vmem:[#allocation7 + $0xb8] sm:$0xf]
    %v1266 = vld [vmem:[#allocation7 + $0xbc] sm:$0xf]
    %v1267 = vld [vmem:[#allocation9] sm:$0x1]
    %v1269 = vlaneseq
    %v1270 = vshrl.u32 %v1269, 7
    %v1271 = vsub.s32 0, %v1270
    %v1272 = vrot.slane %v1267, %v1271
    %v1322 = vunpack.c.l.b16 %v1219
    %v1323 = vunpack.c.l.b16 %v1220
    %v1324 = vunpack.c.l.b16 %v1221
    %v1325 = vunpack.c.l.b16 %v1222
    %v1326 = vunpack.c.l.b16 %v1223
    %v1327 = vunpack.c.l.b16 %v1224
    %v1328 = vunpack.c.l.b16 %v1225
    %v1329 = vunpack.c.l.b16 %v1226
    %v1330 = vunpack.c.l.b16 %v1227
    %v1331 = vunpack.c.l.b16 %v1228
    %v1332 = vunpack.c.l.b16 %v1229
    %v1333 = vunpack.c.l.b16 %v1230
    %v1334 = vunpack.c.l.b16 %v1231
    %v1335 = vunpack.c.l.b16 %v1232
    %v1336 = vunpack.c.l.b16 %v1233
    %v1337 = vunpack.c.l.b16 %v1234
    %v1338 = vunpack.c.l.b16 %v1235
    %v1339 = vunpack.c.l.b16 %v1236
    %v1340 = vunpack.c.l.b16 %v1237
    %v1341 = vunpack.c.l.b16 %v1238
    %v1342 = vunpack.c.l.b16 %v1239
    %v1343 = vunpack.c.l.b16 %v1240
    %v1344 = vunpack.c.l.b16 %v1241
    %v1345 = vunpack.c.l.b16 %v1242
    %v1346 = vunpack.c.l.b16 %v1243
    %v1347 = vunpack.c.l.b16 %v1244
    %v1348 = vunpack.c.l.b16 %v1245
    %v1349 = vunpack.c.l.b16 %v1246
    %v1350 = vunpack.c.l.b16 %v1247
    %v1351 = vunpack.c.l.b16 %v1248
    %v1352 = vunpack.c.l.b16 %v1249
    %v1353 = vunpack.c.l.b16 %v1250
    %v1354 = vunpack.c.l.b16 %v1251
    %v1355 = vunpack.c.l.b16 %v1252
    %v1356 = vunpack.c.l.b16 %v1253
    %v1357 = vunpack.c.l.b16 %v1254
    %v1358 = vunpack.c.l.b16 %v1255
    %v1359 = vunpack.c.l.b16 %v1256
    %v1360 = vunpack.c.l.b16 %v1257
    %v1361 = vunpack.c.l.b16 %v1258
    %v1362 = vunpack.c.l.b16 %v1259
    %v1363 = vunpack.c.l.b16 %v1260
    %v1364 = vunpack.c.l.b16 %v1261
    %v1365 = vunpack.c.l.b16 %v1262
    %v1366 = vunpack.c.l.b16 %v1263
    %v1367 = vunpack.c.l.b16 %v1264
    %v1368 = vunpack.c.l.b16 %v1265
    %v1369 = vunpack.c.l.b16 %v1266
    %v1370 = vpack.c.b16 %v1323, %v1322
    %v1371 = vpack.c.b16 %v1325, %v1324
    %v1372 = vpack.c.b16 %v1327, %v1326
    %v1373 = vpack.c.b16 %v1329, %v1328
    %v1374 = vpack.c.b16 %v1331, %v1330
    %v1375 = vpack.c.b16 %v1333, %v1332
    %v1376 = vpack.c.b16 %v1335, %v1334
    %v1377 = vpack.c.b16 %v1337, %v1336
    %v1378 = vpack.c.b16 %v1339, %v1338
    %v1379 = vpack.c.b16 %v1341, %v1340
    %v1380 = vpack.c.b16 %v1343, %v1342
    %v1381 = vpack.c.b16 %v1345, %v1344
    %v1382 = vpack.c.b16 %v1347, %v1346
    %v1383 = vpack.c.b16 %v1349, %v1348
    %v1384 = vpack.c.b16 %v1351, %v1350
    %v1385 = vpack.c.b16 %v1353, %v1352
    %v1386 = vpack.c.b16 %v1355, %v1354
    %v1387 = vpack.c.b16 %v1357, %v1356
    %v1388 = vpack.c.b16 %v1359, %v1358
    %v1389 = vpack.c.b16 %v1361, %v1360
    %v1390 = vpack.c.b16 %v1363, %v1362
    %v1391 = vpack.c.b16 %v1365, %v1364
    %v1392 = vpack.c.b16 %v1367, %v1366
    %v1393 = vpack.c.b16 %v1369, %v1368
    %1418 = vmatprep.subr.bf16.mxu0 0
    %1419 = vmatpush1.bf16.msra.mxu0 %v1370
    %1420 = vmatprep.subr.bf16.mxu0 0
    %1421 = vmatpush1.bf16.msra.mxu0 %v1371
    %1422 = vmatprep.subr.bf16.mxu0 0
    %1423 = vmatpush1.bf16.msra.mxu0 %v1372
    %1424 = vmatprep.subr.bf16.mxu0 0
    %1425 = vmatpush1.bf16.msra.mxu0 %v1373
    %1426 = vmatprep.subr.bf16.mxu0 0
    %1427 = vmatpush1.bf16.msra.mxu0 %v1374
    %1428 = vmatprep.subr.bf16.mxu0 0
    %1429 = vmatpush1.bf16.msra.mxu0 %v1375
    %1430 = vmatprep.subr.bf16.mxu0 0
    %1431 = vmatpush1.bf16.msra.mxu0 %v1376
    %1432 = vmatprep.subr.bf16.mxu0 0
    %1433 = vmatpush1.bf16.msra.mxu0 %v1377
    %1434 = vmatprep.subr.bf16.mxu0 0
    %1435 = vmatpush1.bf16.msra.mxu0 %v1378
    %1436 = vmatprep.subr.bf16.mxu0 0
    %1437 = vmatpush1.bf16.msra.mxu0 %v1379
    %1438 = vmatprep.subr.bf16.mxu0 0
    %1439 = vmatpush1.bf16.msra.mxu0 %v1380
    %1440 = vmatprep.subr.bf16.mxu0 0
    %1441 = vmatpush1.bf16.msra.mxu0 %v1381
    %1442 = vmatprep.subr.bf16.mxu0 0
    %1443 = vmatpush1.bf16.msra.mxu0 %v1382
    %1444 = vmatprep.subr.bf16.mxu0 0
    %1445 = vmatpush1.bf16.msra.mxu0 %v1383
    %1446 = vmatprep.subr.bf16.mxu0 0
    %1447 = vmatpush1.bf16.msra.mxu0 %v1384
    %1448 = vmatprep.subr.bf16.mxu0 0
    %1449 = vmatpush1.bf16.msra.mxu0 %v1385
    %1450 = vmatprep.mubr.bf16.mxu0 %v1217
    %1451 = vmatmul.mubr.bf16.gmra.mrb[0].mxu0 %v1216
    %v1452 = vpop.f32.mrb[0].mxu0
    %v1453 = vadd.f32 %v1272, %v1452
    %v1454 = vpop.f32.mrb[0].mxu0
    %v1455 = vpop.f32.mrb[0].mxu0
    %v1456 = vpop.f32.mrb[0].mxu0
    %1457 = vdwg.mxu0
    %1458 = vmatprep.subr.bf16.mxu0 0
    %1459 = vmatpush1.bf16.msra.mxu0 %v1386
    %1460 = vmatprep.subr.bf16.mxu0 0
    %1461 = vmatpush1.bf16.msra.mxu0 %v1387
    %1462 = vmatprep.subr.bf16.mxu0 0
    %1463 = vmatpush1.bf16.msra.mxu0 %v1388
    %1464 = vmatprep.subr.bf16.mxu0 0
    %1465 = vmatpush1.bf16.msra.mxu0 %v1389
    %1466 = vmatprep.subr.bf16.mxu0 0
    %1467 = vmatpush1.bf16.msra.mxu0 %v1390
    %1468 = vmatprep.subr.bf16.mxu0 0
    %1469 = vmatpush1.bf16.msra.mxu0 %v1391
    %1470 = vmatprep.subr.bf16.mxu0 0
    %1471 = vmatpush1.bf16.msra.mxu0 %v1392
    %1472 = vmatprep.subr.bf16.mxu0 0
    %1473 = vmatpush1.bf16.msra.mxu0 %v1393
    %1474 = vmatprep.subr.bf16.mxu0 0
    %1475 = vmatpush1.bf16.msra.mxu0 0
    %1476 = vmatprep.subr.bf16.mxu0 0
    %1477 = vmatpush1.bf16.msra.mxu0 0
    %1478 = vmatprep.subr.bf16.mxu0 0
    %1479 = vmatpush1.bf16.msra.mxu0 0
    %1480 = vmatprep.subr.bf16.mxu0 0
    %1481 = vmatpush1.bf16.msra.mxu0 0
    %1482 = vmatprep.subr.bf16.mxu0 0
    %1483 = vmatpush1.bf16.msra.mxu0 0
    %1484 = vmatprep.subr.bf16.mxu0 0
    %1485 = vmatpush1.bf16.msra.mxu0 0
    %1486 = vmatprep.subr.bf16.mxu0 0
    %1487 = vmatpush1.bf16.msra.mxu0 0
    %1488 = vmatprep.subr.bf16.mxu0 0
    %1489 = vmatpush1.bf16.msra.mxu0 0
    %1490 = vmatprep.mubr.bf16.mxu0 0
    %1491 = vmatmul.mubr.bf16.gmra.mrb[0].mxu0 %v1218
    %v1492 = vpop.f32.mrb[0].mxu0
    %v1493 = vadd.f32 %v1453, %v1492
    %v1494 = vpop.f32.mrb[0].mxu0
    %v1495 = vpop.f32.mrb[0].mxu0
    %v1496 = vpop.f32.mrb[0].mxu0
    %1497 = vdwg.mxu0
    %v1498 = vtanh.pop %v1493
    %1499 = vst [vmem:[%s8] sm:$0xff] %v1498
    // Predicated region
    $region54: #{actor_forward.1} parent=1 // pred_check
      _
    $region55: #{actor_forward.1} parent=1 // pred_check_branch
      %1501 = sbr.rel (0) target = $region57
    $region56: #{actor_forward.1} parent=1 // pred_region
      _
    $region57: #{actor_forward.1} parent=1 // pred_fallthru
      _
    // Predicated region
    $region58: #{actor_forward.1} parent=1 // pred_check
      _
    $region59: #{actor_forward.1} parent=1 // pred_check_branch
      %1503 = sbr.rel (0) target = $region61
    $region60: #{actor_forward.1} parent=1 // pred_region
      _
    $region61: #{actor_forward.1} parent=1 // pred_fallthru
      _
    %1504 = vsyncpa [#allocation3], 1
    %1505 = vsyncpa [#allocation5], 1
    %1506 = vsyncpa [#allocation8], 1

</llo_original>
